<compile_context>
chip_gen: v7x
topology: tpu7x:2x2x1
jax: 0.10.0
libtpu: 0.0.40
codegen_flags: <defaults>
</compile_context>

<pallas_src>
import functools
import math

import jax
import jax.numpy as jnp
from jax.experimental import pallas as pl
from jax.experimental.pallas import tpu as pltpu


def _softplus(x):
    # numerically-stable softplus: log(1 + exp(x))
    return jnp.maximum(x, 0.0) + jnp.log1p(jnp.exp(-jnp.abs(x)))


# --------------------------------------------------------------------------
# Stage 1: xw_cat[i, :H] = X[i] @ W_enc ; xw_cat[i, H:] = Xc[i] @ W_enc
# (lane-dense (tm, 2H) bf16 output; bf16 MXU operands, f32 accumulation)
# --------------------------------------------------------------------------
def encode_features_kernel(x_ref, xc_ref, w_ref, o_ref):
    h = w_ref.shape[1]
    o_ref[:, :h] = jnp.dot(x_ref[...], w_ref[...],
                           preferred_element_type=jnp.float32).astype(o_ref.dtype)
    o_ref[:, h:] = jnp.dot(xc_ref[...], w_ref[...],
                           preferred_element_type=jnp.float32).astype(o_ref.dtype)


# --------------------------------------------------------------------------
# Stage 2: h_cat = relu(A @ xw_cat), row-strip tiled over A only
#   xw_cat is VMEM-resident (constant index_map) -> A streamed exactly once.
#   Also emits per-row-block partial column sums of h_pos for the summary s.
# --------------------------------------------------------------------------
def spmm_relu_kernel(a_ref, xw_ref, h_ref, colsum_ref):
    hidden = xw_ref.shape[1] // 2
    h = jnp.maximum(
        jnp.dot(a_ref[...], xw_ref[...], preferred_element_type=jnp.float32),
        0.0)                                              # (tm, 2H) f32
    h_ref[...] = h.astype(h_ref.dtype)                    # bf16 writeback
    colsum_ref[0] = jnp.sum(h[:, :hidden], axis=0, keepdims=True)   # (1, H) f32


# --------------------------------------------------------------------------
# Stage 3 (row-tiled): summary, discriminator, BCE-with-logits losses -> scalar
#   h_pos = h_cat[:, :H], h_neg = h_cat[:, H:]
#   s       = sigmoid( (sum of partial colsums) / N )            (1, H)
#   ws_row  = s @ W_disc.T  (W_disc.T passed in)                 (1, H)  == (W_disc @ s)^T
#   logits  = sum(h * ws_row, axis=-1)                           (tm, 1)  (no skinny matmul)
#   loss    = (sum softplus(-pos) + sum softplus(neg)) / N       accumulated across blocks
# --------------------------------------------------------------------------
def dgi_loss_kernel(colsum_ref, wt_ref, h_ref, out_ref,
                    ws_ref, acc_pos_ref, acc_neg_ref, *, n_total, hidden):
    i = pl.program_id(0)
    inv_n = 1.0 / float(n_total)          # global-N normalization (not tile size)

    @pl.when(i == 0)
    def _():
        col_mean = jnp.sum(colsum_ref[...], axis=0) * inv_n          # (1, H)
        s = jax.nn.sigmoid(col_mean)                                 # (1, H)
        ws_ref[...] = jnp.dot(s, wt_ref[...],
                              preferred_element_type=jnp.float32)    # (1, H)
        acc_pos_ref[...] = jnp.zeros_like(acc_pos_ref)
        acc_neg_ref[...] = jnp.zeros_like(acc_neg_ref)

    h = h_ref[...].astype(jnp.float32)                               # (tm, 2H)
    h_pos = h[:, :hidden]
    h_neg = h[:, hidden:]
    ws = ws_ref[...]                                                 # (1, H)

    pos_logits = jnp.sum(h_pos * ws, axis=-1, keepdims=True)         # (tm, 1)
    neg_logits = jnp.sum(h_neg * ws, axis=-1, keepdims=True)         # (tm, 1)

    acc_pos_ref[...] += jnp.sum(_softplus(-pos_logits), keepdims=True)  # (1, 1)
    acc_neg_ref[...] += jnp.sum(_softplus(neg_logits), keepdims=True)   # (1, 1)

    @pl.when(i == pl.num_programs(0) - 1)
    def _():
        out_ref[...] = (acc_pos_ref[...] + acc_neg_ref[...]) * inv_n


def dgi_forward(A, X, Xc, W_enc, W_disc, *, tm=256):
    N, F = X.shape
    H = W_enc.shape[1]
    H2 = 2 * H
    tm = min(tm, N)
    assert N % tm == 0
    G = N // tm

    # bf16 MXU operands (f32 accumulation inside the kernels).  A should arrive
    # already in bf16 (built that way) so no extra full-HBM cast pass is paid.
    a_bf = A if A.dtype == jnp.bfloat16 else A.astype(jnp.bfloat16)
    x_bf = X.astype(jnp.bfloat16)
    xc_bf = Xc.astype(jnp.bfloat16)
    w_bf = W_enc.astype(jnp.bfloat16)
    w_disc_t = W_disc.T.astype(jnp.float32)   # host-side transpose, none in-kernel

    # ---- stage 1: xw_cat = [X @ W_enc, Xc @ W_enc]  (N, 2H) bf16 ----
    xw_cat = pl.pallas_call(
        encode_features_kernel,
        out_shape=jax.ShapeDtypeStruct((N, H2), jnp.bfloat16),
        grid_spec=pltpu.PrefetchScalarGridSpec(
            num_scalar_prefetch=0,
            grid=(G,),
            in_specs=[
                pl.BlockSpec((tm, F), lambda i: (i, 0)),
                pl.BlockSpec((tm, F), lambda i: (i, 0)),
                pl.BlockSpec((F, H), lambda i: (0, 0)),
            ],
            out_specs=pl.BlockSpec((tm, H2), lambda i: (i, 0)),
        ),
        compiler_params=pltpu.CompilerParams(
            dimension_semantics=("parallel",)),
    )(x_bf, xc_bf, w_bf)

    # ---- stage 2: h_cat = relu(A @ xw_cat) (bf16) + partial colsums of h_pos ----
    # xw_cat (512*N bytes bf16) is VMEM-resident; A row strips streamed once.
    # TODO(synk): for very large N (A strip (tm, N) no longer fitting VMEM,
    # especially on v7x's 64 MiB) fall back to a (row, K) grid with an f32
    # accumulator; not needed at these sizes.
    h_cat, colsum = pl.pallas_call(
        spmm_relu_kernel,
        out_shape=(
            jax.ShapeDtypeStruct((N, H2), jnp.bfloat16),
            jax.ShapeDtypeStruct((G, 1, H), jnp.float32),
        ),
        grid_spec=pltpu.PrefetchScalarGridSpec(
            num_scalar_prefetch=0,
            grid=(G,),
            in_specs=[
                pl.BlockSpec((tm, N), lambda i: (i, 0)),    # A row strip (streamed)
                pl.BlockSpec((N, H2), lambda i: (0, 0)),    # xw_cat (VMEM-resident)
            ],
            out_specs=[
                pl.BlockSpec((tm, H2), lambda i: (i, 0)),
                pl.BlockSpec((1, 1, H), lambda i: (i, 0, 0)),
            ],
        ),
        compiler_params=pltpu.CompilerParams(
            dimension_semantics=("parallel",)),
        cost_estimate=pl.CostEstimate(
            flops=4 * N * N * H,
            transcendentals=0,
            bytes_accessed=2 * N * N + 2 * N * H2 + 2 * N * H2 + 4 * G * H),
    )(a_bf, xw_cat)

    # ---- stage 3: summary + discriminator + BCE losses -> (1,1) scalar ----
    loss_kernel = functools.partial(dgi_loss_kernel, n_total=N, hidden=H)
    out = pl.pallas_call(
        loss_kernel,
        out_shape=jax.ShapeDtypeStruct((1, 1), jnp.float32),
        grid_spec=pltpu.PrefetchScalarGridSpec(
            num_scalar_prefetch=0,
            grid=(G,),
            in_specs=[
                pl.BlockSpec((G, 1, H), lambda i: (0, 0, 0)),   # partial colsums (tiny)
                pl.BlockSpec((H, H), lambda i: (0, 0)),         # W_disc.T
                pl.BlockSpec((tm, H2), lambda i: (i, 0)),       # h_cat row block
            ],
            out_specs=pl.BlockSpec((1, 1), lambda i: (0, 0)),
            scratch_shapes=[
                pltpu.VMEM((1, H), jnp.float32),   # ws_row = (W_disc @ s)^T
                pltpu.VMEM((1, 1), jnp.float32),   # running sum softplus(-pos)
                pltpu.VMEM((1, 1), jnp.float32),   # running sum softplus(+neg)
            ],
        ),
        compiler_params=pltpu.CompilerParams(
            dimension_semantics=("arbitrary",)),   # sequential loss accumulation
    )(colsum, w_disc_t, h_cat)
    return out[0, 0]


def build_normalized_adjacency(n, dtype=jnp.bfloat16):
    # deterministic ring graph + self loops, symmetric normalization D^-1/2 A D^-1/2
    # Built in f32, stored directly in bf16 so the kernel never pays a separate
    # full-HBM cast pass over A.
    idx = jnp.arange(n)
    adj = jnp.zeros((n, n), jnp.float32)
    adj = adj.at[idx, idx].set(1.0)                  # self loops
    adj = adj.at[idx, (idx + 1) % n].set(1.0)        # ring edges
    adj = adj.at[(idx + 1) % n, idx].set(1.0)
    deg = jnp.sum(adj, axis=1)
    d_inv_sqrt = 1.0 / jnp.sqrt(deg)
    return (adj * d_inv_sqrt[:, None] * d_inv_sqrt[None, :]).astype(dtype)


if __name__ == "__main__":
    # lane/sublane-dense sizes: N multiple of 256, F = H = 128
    N, F, H = 512, 128, 128

    key = jax.random.PRNGKey(0)
    k_x, k_perm, k_enc, k_disc = jax.random.split(key, 4)

    # inputs
    X = jax.random.normal(k_x, (N, F), jnp.float32)
    # TODO(synk): torch.randperm has no in-kernel Pallas equivalent; the row
    # permutation (corruption) is host-side glue, as in the reference module.
    perm = jax.random.permutation(k_perm, N)
    Xc = X[perm]
    A = build_normalized_adjacency(N)   # stored in bf16

    # parameters (deterministic init, matching module shapes / init ranges)
    # Discriminator.weight ~ U(-1/sqrt(H), 1/sqrt(H)), shape (H, H)
    bound_d = 1.0 / math.sqrt(H)
    W_disc = jax.random.uniform(k_disc, (H, H), jnp.float32, -bound_d, bound_d)
    # TODO(synk): real DGI wraps an arbitrary `encoder` module; a 1-layer GCN
    # (relu(A @ X @ W_enc)) is used as a deterministic synthetic stand-in.
    bound_e = 1.0 / math.sqrt(F)
    W_enc = jax.random.uniform(k_enc, (F, H), jnp.float32, -bound_e, bound_e)

    loss = dgi_forward(A, X, Xc, W_enc, W_disc)
    jax.block_until_ready(loss)

    # sanity: loss is a finite scalar
    assert loss.shape == ()
    assert bool(jnp.isfinite(loss))

    print("KERNEL_OK")
</pallas_src>

<mosaic_0001>
module attributes {stable_mosaic.version = 11 : i64} {
  func.func @encode_features_kernel(%arg0: i32, %arg1: memref<256x128xbf16, #tpu.memory_space<vmem>>, %arg2: memref<256x128xbf16, #tpu.memory_space<vmem>>, %arg3: memref<128x128xbf16, #tpu.memory_space<vmem>>, %arg4: memref<256x256xbf16, #tpu.memory_space<vmem>>) attributes {dimension_semantics = [#tpu.dimension_semantics<parallel>], iteration_bounds = array<i64: 2>, scalar_prefetch = 0 : i64, scratch_operands = 0 : i64, tpu.core_type = #tpu.core_type<tc>, window_params = [{transform_indices = @transform_0, window_bounds = array<i64: 256, 128>}, {transform_indices = @transform_1, window_bounds = array<i64: 256, 128>}, {pipeline_mode = #tpu.pipeline_mode<synchronous>, transform_indices = @transform_2, window_bounds = array<i64: 128, 128>}, {transform_indices = @transform_3, window_bounds = array<i64: 256, 256>}]} {
    %c0 = arith.constant 0 : index
    %c0_0 = arith.constant 0 : index
    %0 = vector.load %arg1[%c0, %c0_0] : memref<256x128xbf16, #tpu.memory_space<vmem>>, vector<256x128xbf16>
    %c0_1 = arith.constant 0 : index
    %c0_2 = arith.constant 0 : index
    %1 = vector.load %arg3[%c0_1, %c0_2] : memref<128x128xbf16, #tpu.memory_space<vmem>>, vector<128x128xbf16>
    %cst = arith.constant dense<0.000000e+00> : vector<256x128xf32>
    %2 = tpu.matmul %0, %1, %cst {dimension_numbers = #tpu.dot_dimension_numbers<[1], [0], [0], [1], [0, 0, 1, 1], [], []>} : vector<256x128xbf16>, vector<128x128xbf16>, vector<256x128xf32> -> vector<256x128xf32>
    %3 = arith.truncf %2 : vector<256x128xf32> to vector<256x128xbf16>
    %c0_3 = arith.constant 0 : index
    %c0_4 = arith.constant 0 : index
    %4 = vector.load %arg4[%c0_3, %c0_4] : memref<256x256xbf16, #tpu.memory_space<vmem>>, vector<256x128xbf16>
    tpu.vector_store %arg4[%c0_3, %c0_4], %3 {strides = array<i32>} : memref<256x256xbf16, #tpu.memory_space<vmem>>, vector<256x128xbf16>,
    %c0_5 = arith.constant 0 : index
    %c0_6 = arith.constant 0 : index
    %5 = vector.load %arg2[%c0_5, %c0_6] : memref<256x128xbf16, #tpu.memory_space<vmem>>, vector<256x128xbf16>
    %c0_7 = arith.constant 0 : index
    %c0_8 = arith.constant 0 : index
    %6 = vector.load %arg3[%c0_7, %c0_8] : memref<128x128xbf16, #tpu.memory_space<vmem>>, vector<128x128xbf16>
    %cst_9 = arith.constant dense<0.000000e+00> : vector<256x128xf32>
    %7 = tpu.matmul %5, %6, %cst_9 {dimension_numbers = #tpu.dot_dimension_numbers<[1], [0], [0], [1], [0, 0, 1, 1], [], []>} : vector<256x128xbf16>, vector<128x128xbf16>, vector<256x128xf32> -> vector<256x128xf32>
    %8 = arith.truncf %7 : vector<256x128xf32> to vector<256x128xbf16>
    %c0_10 = arith.constant 0 : index
    %c128 = arith.constant 128 : index
    %9 = vector.load %arg4[%c0_10, %c128] : memref<256x256xbf16, #tpu.memory_space<vmem>>, vector<256x128xbf16>
    tpu.vector_store %arg4[%c0_10, %c128], %8 {strides = array<i32>} : memref<256x256xbf16, #tpu.memory_space<vmem>>, vector<256x128xbf16>,
    return
  }
  func.func @transform_0(%arg0: i32) -> (i32, i32) {
    %c0_i32 = arith.constant 0 : i32
    %c0_i32_0 = arith.constant 0 : i32
    return %arg0, %c0_i32 : i32, i32
  }
  func.func @transform_1(%arg0: i32) -> (i32, i32) {
    %c0_i32 = arith.constant 0 : i32
    %c0_i32_0 = arith.constant 0 : i32
    return %arg0, %c0_i32 : i32, i32
  }
  func.func @transform_2(%arg0: i32) -> (i32, i32) {
    %c0_i32 = arith.constant 0 : i32
    %c0_i32_0 = arith.constant 0 : i32
    %c0_i32_1 = arith.constant 0 : i32
    return %c0_i32, %c0_i32_0 : i32, i32
  }
  func.func @transform_3(%arg0: i32) -> (i32, i32) {
    %c0_i32 = arith.constant 0 : i32
    %c0_i32_0 = arith.constant 0 : i32
    return %arg0, %c0_i32 : i32, i32
  }
}

</mosaic_0001>

<llo_original>
// kernel: tpu_custom_call.1
$region0: #{tpu_custom_call.1}
  #allocation0 [shape = 'u32[]', space=smem, size = 0x4, offset = 0x4, fixed_abs, tag = 'smem constant byte address 0x4 - core index']
  #allocation1 [shape = 'u32[144,128]{1,0:T(1,128)}', space=vmem, size = 0x12000, scoped, tag = 'internal scratch']
  %s0 = inlined_call_operand.hbm [shape: bf16[512,128], index: 0, kind: input, shape index: {}]
  %s1 = inlined_call_operand.hbm [shape: bf16[512,128], index: 1, kind: input, shape index: {}]
  %s2 = inlined_call_operand.hbm [shape: bf16[128,128], index: 2, kind: input, shape index: {}]
  %s3 = inlined_call_operand.hbm [shape: bf16[512,256], index: 3, kind: output, shape index: {}]
  %s4 = sld [smem:[#allocation0]]
  $region57: #{tpu_custom_call.1} parent=0
    _
  %s6 = ssub.s32 1, %s4
  %s7 = scalar_select 0, %s6, %s4
  $region1: #{tpu_custom_call.1} parent=0
    #allocation2 [shape = 'u8[131072]{0}', space=vmem, size = 0x20000, scoped, tag = 'input window, operand 0']
    #allocation3 [shape = 's32[2]{0}', space=sflag, size = 0x8, scoped, tag = 'scoped memory for tpu_custom_call.1']
    #allocation4 [shape = 's32[2]{0}', space=sflag, size = 0x8, scoped, tag = 'scoped memory for tpu_custom_call.1']
    #allocation5 [shape = 'u8[131072]{0}', space=vmem, size = 0x20000, scoped, tag = 'input window, operand 1']
    #allocation6 [shape = 's32[2]{0}', space=sflag, size = 0x8, scoped, tag = 'scoped memory for tpu_custom_call.1']
    #allocation7 [shape = 'u8[32768]{0}', space=vmem, size = 0x8000, scoped, tag = 'input window, operand 2, single buffered']
    #allocation8 [shape = 'u8[262144]{0}', space=vmem, size = 0x40000, scoped, tag = 'output window, operand 0']
    %8 = vsyncpa [#allocation3], 0
    %s9 = scalar_lea.sflag [#allocation3], 1
    %10 = vsyncpa %s9, 0
    %11 = vsyncpa [#allocation6], 0
    %s12 = scalar_lea.sflag [#allocation6], 1
    %13 = vsyncpa %s12, 0
    %14 = vsyncpa [#allocation4], 0
    %s15 = scalar_lea.sflag [#allocation4], 1
    %16 = vsyncpa %s15, 0
    loop: start=0, step=1, limit=4
    $region2: #{tpu_custom_call.1} parent=1 // loop_pre_header
      _
    $region3: #{tpu_custom_call.1} parent=1 // loop_header
      %s18 = sphi 0, %s22
      %p19 = scmp.ge.s32.totalorder %s18, 4
      %s28 = sphi 0, %s30
      %s31 = sphi 0, %s28
      %s32 = sphi 0, %s31
      %s48 = sphi 0, %s32
      %s54 = sphi 0, %s56
      %s57 = sphi 0, %s54
      %s58 = sphi 0, %s57
      %s74 = sphi 0, %s58
      %s78 = sphi 0, %s78
      %s80 = sphi 0, %s78
      %s81 = sphi 0, %s80
      %s95 = sphi 0, %s81
      %s101 = sphi 0, %s103
      %s104 = sphi 0, %s101
      %s105 = sphi 0, %s104
      %s121 = sphi 0, %s105
    $region4: #{tpu_custom_call.1} parent=1 // loop_header_branch
      %21 = sbr.rel (%p19) target = $region8
    $region5: #{tpu_custom_call.1} parent=1 // loop_body
      %s23 = ssub.s32 %s18, 1
      %s24 = ssub.s32 %s18, 2
      %s25 = sadd.s32 %s18, 1
      %s26 = ssub.s32 %s18, %s25
      %p27 = scmp.eq.s32.totalorder %s26, 0
      %s29 = sadd.s32 %s28, 1
      %s30 = scalar_select %p27, %s28, %s29
      %p33 = pneg %p27
      %p34 = scmp.eq.s32.totalorder %s18, 1
      %p35 = por %p33, %p34
      %p36 = scmp.ne.s32.totalorder %s28, %s31
      %p37 = scmp.eq.s32.totalorder %s18, 0
      %p38 = por %p36, %p37
      %p39 = scmp.ne.s32.totalorder %s28, %s31
      %p40 = scmp.eq.s32.totalorder %s23, 1
      %p41 = por %p39, %p40
      %p42 = scmp.ne.s32.totalorder %s31, %s32
      %p43 = scmp.eq.s32.totalorder %s23, 0
      %p44 = por %p42, %p43
      %p45 = scmp.ne.s32.totalorder %s31, %s32
      %p46 = scmp.eq.s32.totalorder %s24, 1
      %p47 = por %p45, %p46
      %p49 = scmp.ne.s32.totalorder %s32, %s48
      %p50 = scmp.eq.s32.totalorder %s24, 0
      %p51 = por %p49, %p50
      %s52 = ssub.s32 %s18, %s25
      %p53 = scmp.eq.s32.totalorder %s52, 0
      %s55 = sadd.s32 %s54, 1
      %s56 = scalar_select %p53, %s54, %s55
      %p59 = pneg %p53
      %p60 = scmp.eq.s32.totalorder %s18, 1
      %p61 = por %p59, %p60
      %p62 = scmp.ne.s32.totalorder %s54, %s57
      %p63 = scmp.eq.s32.totalorder %s18, 0
      %p64 = por %p62, %p63
      %p65 = scmp.ne.s32.totalorder %s54, %s57
      %p66 = scmp.eq.s32.totalorder %s23, 1
      %p67 = por %p65, %p66
      %p68 = scmp.ne.s32.totalorder %s57, %s58
      %p69 = scmp.eq.s32.totalorder %s23, 0
      %p70 = por %p68, %p69
      %p71 = scmp.ne.s32.totalorder %s57, %s58
      %p72 = scmp.eq.s32.totalorder %s24, 1
      %p73 = por %p71, %p72
      %p75 = scmp.ne.s32.totalorder %s58, %s74
      %p76 = scmp.eq.s32.totalorder %s24, 0
      %p77 = por %p75, %p76
      %s79 = sadd.s32 %s78, 1
      %p82 = scmp.eq.s32.totalorder %s18, 1
      %p83 = scmp.ne.s32.totalorder %s78, %s80
      %p84 = scmp.eq.s32.totalorder %s18, 0
      %p85 = por %p83, %p84
      %p86 = scmp.ne.s32.totalorder %s78, %s80
      %p87 = scmp.eq.s32.totalorder %s23, 1
      %p88 = por %p86, %p87
      %p89 = scmp.ne.s32.totalorder %s80, %s81
      %p90 = scmp.eq.s32.totalorder %s23, 0
      %p91 = por %p89, %p90
      %p92 = scmp.ne.s32.totalorder %s80, %s81
      %p93 = scmp.eq.s32.totalorder %s24, 1
      %p94 = por %p92, %p93
      %p96 = scmp.ne.s32.totalorder %s81, %s95
      %p97 = scmp.eq.s32.totalorder %s24, 0
      %p98 = por %p96, %p97
      %s99 = ssub.s32 %s18, %s25
      %p100 = scmp.eq.s32.totalorder %s99, 0
      %s102 = sadd.s32 %s101, 1
      %s103 = scalar_select %p100, %s101, %s102
      %p106 = pneg %p100
      %p107 = scmp.eq.s32.totalorder %s18, 1
      %p108 = por %p106, %p107
      %p109 = scmp.ne.s32.totalorder %s101, %s104
      %p110 = scmp.eq.s32.totalorder %s18, 0
      %p111 = por %p109, %p110
      %p112 = scmp.ne.s32.totalorder %s101, %s104
      %p113 = scmp.eq.s32.totalorder %s23, 1
      %p114 = por %p112, %p113
      %p115 = scmp.ne.s32.totalorder %s104, %s105
      %p116 = scmp.eq.s32.totalorder %s23, 0
      %p117 = por %p115, %p116
      %p118 = scmp.ne.s32.totalorder %s104, %s105
      %p119 = scmp.eq.s32.totalorder %s24, 1
      %p120 = por %p118, %p119
      %p122 = scmp.ne.s32.totalorder %s105, %s121
      %p123 = scmp.eq.s32.totalorder %s24, 0
      %p124 = por %p122, %p123
      %p125 = scmp.le.s32.totalorder 1, %s18
      %p126 = scmp.lt.s32.totalorder %s18, 3
      %p127 = pnand %p125, %p126
      %p128 = pneg %p127
      // Predicated region
      $region9: #{tpu_custom_call.1} parent=5 // pred_check
        _
      $region10: #{tpu_custom_call.1} parent=5 // pred_check_branch
        %130 = sbr.rel (%p127) target = $region12
      $region11: #{tpu_custom_call.1} parent=5 // pred_region
        %s131 = ssub.s32 %s18, 1
        // Predicated region
        $region13: #{tpu_custom_call.1} parent=11 // pred_check
          %p132 = pneg %p91
        $region14: #{tpu_custom_call.1} parent=11 // pred_check_branch
          %134 = sbr.rel (%p132) target = $region16
        $region15: #{tpu_custom_call.1} parent=11 // pred_region
          %s136 = ssub.s32 1024, 1024
          %137 = vsyncadd [#allocation6], %s136
          %s138 = sshll.u32 [#allocation7], 4
          %s139 = int_to_ptr.vmem [resolvable:$true] %s138
          %144 = dma.hbm_to_vmem [thread:$0]  %s2, 1024, %s139, [#allocation6], 64, 64, 4
        $region16: #{tpu_custom_call.1} parent=11 // pred_fallthru
          _
      $region12: #{tpu_custom_call.1} parent=5 // pred_fallthru
        _
      %p145 = scmp.lt.s32.totalorder %s18, 2
      // Predicated region
      $region17: #{tpu_custom_call.1} parent=5 // pred_check
        %p146 = pneg %p145
      $region18: #{tpu_custom_call.1} parent=5 // pred_check_branch
        %148 = sbr.rel (%p146) target = $region20
      $region19: #{tpu_custom_call.1} parent=5 // pred_region
        // Predicated region
        $region21: #{tpu_custom_call.1} parent=19 // pred_check
          %p149 = pneg %p38
        $region22: #{tpu_custom_call.1} parent=19 // pred_check_branch
          %151 = sbr.rel (%p149) target = $region24
        $region23: #{tpu_custom_call.1} parent=19 // pred_region
          %s152 = sand.u32 %s28, 1
          %s153 = scalar_lea.sflag [#allocation3], %s152
          %s154 = sand.u32 %s28, 1
          %s155 = smul.addr %s154, 128
          %s156 = scalar_lea.vmem [#allocation2], %s155
          %s157 = smul.u32 32, %s18
          %s159 = ssub.s32 2048, 2048
          %160 = vsyncadd %s153, %s159
          %s161 = smul.addr %s157, 64
          %s162 = scalar_lea.hbm %s0, %s161
          %s163 = sshll.u32 %s156, 4
          %s164 = int_to_ptr.vmem [resolvable:$true] %s163
          %169 = dma.hbm_to_vmem [thread:$0]  %s162, 2048, %s164, %s153, 64, 64, 4
        $region24: #{tpu_custom_call.1} parent=19 // pred_fallthru
          _
        // Predicated region
        $region25: #{tpu_custom_call.1} parent=19 // pred_check
          %p170 = pneg %p64
        $region26: #{tpu_custom_call.1} parent=19 // pred_check_branch
          %172 = sbr.rel (%p170) target = $region28
        $region27: #{tpu_custom_call.1} parent=19 // pred_region
          %s173 = sand.u32 %s18, 1
          %s174 = scalar_lea.sflag [#allocation6], %s173
          %s175 = sand.u32 %s54, 1
          %s176 = smul.addr %s175, 128
          %s177 = scalar_lea.vmem [#allocation5], %s176
          %s178 = smul.u32 32, %s18
          %s180 = ssub.s32 2048, 2048
          %181 = vsyncadd %s174, %s180
          %s182 = smul.addr %s178, 64
          %s183 = scalar_lea.hbm %s1, %s182
          %s184 = sshll.u32 %s177, 4
          %s185 = int_to_ptr.vmem [resolvable:$true] %s184
          %190 = dma.hbm_to_vmem [thread:$0]  %s183, 2048, %s185, %s174, 64, 64, 4
        $region28: #{tpu_custom_call.1} parent=19 // pred_fallthru
          _
      $region20: #{tpu_custom_call.1} parent=5 // pred_fallthru
        _
      %p191 = scmp.le.s32.totalorder 1, %s18
      %p192 = scmp.lt.s32.totalorder %s18, 3
      %p193 = pnand %p191, %p192
      %p194 = pneg %p193
      // Predicated region
      $region29: #{tpu_custom_call.1} parent=5 // pred_check
        _
      $region30: #{tpu_custom_call.1} parent=5 // pred_check_branch
        %196 = sbr.rel (%p193) target = $region32
      $region31: #{tpu_custom_call.1} parent=5 // pred_region
        %s197 = ssub.s32 %s18, 1
        %s198 = sand.u32 %s31, 1
        %s199 = scalar_lea.sflag [#allocation3], %s198
        %s200 = sand.u32 %s31, 1
        %s201 = smul.addr %s200, 128
        %s202 = scalar_lea.vmem [#allocation2], %s201
        // Predicated region
        $region33: #{tpu_custom_call.1} parent=31 // pred_check
          %p203 = pneg %p44
        $region34: #{tpu_custom_call.1} parent=31 // pred_check_branch
          %205 = sbr.rel (%p203) target = $region36
        $region35: #{tpu_custom_call.1} parent=31 // pred_region
          %206 = dma.done %s199, 2048
        $region36: #{tpu_custom_call.1} parent=31 // pred_fallthru
          _
        %s207 = sand.u32 %s23, 1
        %s208 = scalar_lea.sflag [#allocation6], %s207
        %s209 = sand.u32 %s57, 1
        %s210 = smul.addr %s209, 128
        %s211 = scalar_lea.vmem [#allocation5], %s210
        // Predicated region
        $region37: #{tpu_custom_call.1} parent=31 // pred_check
          %p212 = pneg %p70
        $region38: #{tpu_custom_call.1} parent=31 // pred_check_branch
          %214 = sbr.rel (%p212) target = $region40
        $region39: #{tpu_custom_call.1} parent=31 // pred_region
          %215 = dma.done %s208, 2048
        $region40: #{tpu_custom_call.1} parent=31 // pred_fallthru
          _
        // Predicated region
        $region41: #{tpu_custom_call.1} parent=31 // pred_check
          %p216 = pneg %p91
        $region42: #{tpu_custom_call.1} parent=31 // pred_check_branch
          %218 = sbr.rel (%p216) target = $region44
        $region43: #{tpu_custom_call.1} parent=31 // pred_region
          %219 = dma.done [#allocation6], 1024
        $region44: #{tpu_custom_call.1} parent=31 // pred_fallthru
          _
        %s220 = sand.u32 %s31, 1
        %s221 = scalar_lea.sflag [#allocation3], %s220
        %s222 = sand.u32 %s31, 1
        %s223 = smul.addr %s222, 128
        %s224 = scalar_lea.vmem [#allocation2], %s223
        %p225 = pneg %p44
        %p226 = pneg %p41
        %s227 = sand.u32 %s23, 1
        %s228 = scalar_lea.sflag [#allocation6], %s227
        %s229 = sand.u32 %s57, 1
        %s230 = smul.addr %s229, 128
        %s231 = scalar_lea.vmem [#allocation5], %s230
        %p232 = pneg %p70
        %p233 = pneg %p67
        %p234 = pneg %p91
        %p235 = pneg %p88
        %p236 = pneg %p117
        %p237 = pneg %p114
        %s238 = sand.u32 %s104, 1
        %s239 = scalar_lea.sflag [#allocation4], %s238
        %s240 = sand.u32 %s104, 1
        %s241 = smul.addr %s240, 256
        %s242 = scalar_lea.vmem [#allocation8], %s241
        %s243 = smul.u32 32, %s23
        %s244 = smul.u32 32, %s23
        %s245 = smul.u32 32, %s23
        %v247 = vld [vmem:[%s202] sm:$0xf]
        %v248 = vld [vmem:[%s202 + $0x4] sm:$0xf]
        %v249 = vld [vmem:[%s202 + $0x8] sm:$0xf]
        %v250 = vld [vmem:[%s202 + $0xc] sm:$0xf]
        %v251 = vld [vmem:[%s202 + $0x10] sm:$0xf]
        %v252 = vld [vmem:[%s202 + $0x14] sm:$0xf]
        %v253 = vld [vmem:[%s202 + $0x18] sm:$0xf]
        %v254 = vld [vmem:[%s202 + $0x1c] sm:$0xf]
        %v255 = vld [vmem:[%s202 + $0x20] sm:$0xf]
        %v256 = vld [vmem:[%s202 + $0x24] sm:$0xf]
        %v257 = vld [vmem:[%s202 + $0x28] sm:$0xf]
        %v258 = vld [vmem:[%s202 + $0x2c] sm:$0xf]
        %v259 = vld [vmem:[%s202 + $0x30] sm:$0xf]
        %v260 = vld [vmem:[%s202 + $0x34] sm:$0xf]
        %v261 = vld [vmem:[%s202 + $0x38] sm:$0xf]
        %v262 = vld [vmem:[%s202 + $0x3c] sm:$0xf]
        %v263 = vld [vmem:[%s202 + $0x40] sm:$0xf]
        %v264 = vld [vmem:[%s202 + $0x44] sm:$0xf]
        %v265 = vld [vmem:[%s202 + $0x48] sm:$0xf]
        %v266 = vld [vmem:[%s202 + $0x4c] sm:$0xf]
        %v267 = vld [vmem:[%s202 + $0x50] sm:$0xf]
        %v268 = vld [vmem:[%s202 + $0x54] sm:$0xf]
        %v269 = vld [vmem:[%s202 + $0x58] sm:$0xf]
        %v270 = vld [vmem:[%s202 + $0x5c] sm:$0xf]
        %v271 = vld [vmem:[%s202 + $0x60] sm:$0xf]
        %v272 = vld [vmem:[%s202 + $0x64] sm:$0xf]
        %v273 = vld [vmem:[%s202 + $0x68] sm:$0xf]
        %v274 = vld [vmem:[%s202 + $0x6c] sm:$0xf]
        %v275 = vld [vmem:[%s202 + $0x70] sm:$0xf]
        %v276 = vld [vmem:[%s202 + $0x74] sm:$0xf]
        %v277 = vld [vmem:[%s202 + $0x78] sm:$0xf]
        %v278 = vld [vmem:[%s202 + $0x7c] sm:$0xf]
        %v279 = vld [vmem:[#allocation7] sm:$0xf]
        %v280 = vld [vmem:[#allocation7 + $0x4] sm:$0xf]
        %v281 = vld [vmem:[#allocation7 + $0x8] sm:$0xf]
        %v282 = vld [vmem:[#allocation7 + $0xc] sm:$0xf]
        %v283 = vld [vmem:[#allocation7 + $0x10] sm:$0xf]
        %v284 = vld [vmem:[#allocation7 + $0x14] sm:$0xf]
        %v285 = vld [vmem:[#allocation7 + $0x18] sm:$0xf]
        %v286 = vld [vmem:[#allocation7 + $0x1c] sm:$0xf]
        %v287 = vld [vmem:[#allocation7 + $0x20] sm:$0xf]
        %v288 = vld [vmem:[#allocation7 + $0x24] sm:$0xf]
        %v289 = vld [vmem:[#allocation7 + $0x28] sm:$0xf]
        %v290 = vld [vmem:[#allocation7 + $0x2c] sm:$0xf]
        %v291 = vld [vmem:[#allocation7 + $0x30] sm:$0xf]
        %v292 = vld [vmem:[#allocation7 + $0x34] sm:$0xf]
        %v293 = vld [vmem:[#allocation7 + $0x38] sm:$0xf]
        %v294 = vld [vmem:[#allocation7 + $0x3c] sm:$0xf]
        %v327 = vunpack.c.l.b16 %v247
        %v328 = vunpack.c.l.b16 %v248
        %v329 = vunpack.c.l.b16 %v249
        %v330 = vunpack.c.l.b16 %v250
        %v331 = vunpack.c.l.b16 %v251
        %v332 = vunpack.c.l.b16 %v252
        %v333 = vunpack.c.l.b16 %v253
        %v334 = vunpack.c.l.b16 %v254
        %v335 = vunpack.c.l.b16 %v255
        %v336 = vunpack.c.l.b16 %v256
        %v337 = vunpack.c.l.b16 %v257
        %v338 = vunpack.c.l.b16 %v258
        %v339 = vunpack.c.l.b16 %v259
        %v340 = vunpack.c.l.b16 %v260
        %v341 = vunpack.c.l.b16 %v261
        %v342 = vunpack.c.l.b16 %v262
        %v343 = vunpack.c.l.b16 %v263
        %v344 = vunpack.c.l.b16 %v264
        %v345 = vunpack.c.l.b16 %v265
        %v346 = vunpack.c.l.b16 %v266
        %v347 = vunpack.c.l.b16 %v267
        %v348 = vunpack.c.l.b16 %v268
        %v349 = vunpack.c.l.b16 %v269
        %v350 = vunpack.c.l.b16 %v270
        %v351 = vunpack.c.l.b16 %v271
        %v352 = vunpack.c.l.b16 %v272
        %v353 = vunpack.c.l.b16 %v273
        %v354 = vunpack.c.l.b16 %v274
        %v355 = vunpack.c.l.b16 %v275
        %v356 = vunpack.c.l.b16 %v276
        %v357 = vunpack.c.l.b16 %v277
        %v358 = vunpack.c.l.b16 %v278
        %v359 = vpack.c.b16 %v328, %v327
        %v360 = vpack.c.b16 %v330, %v329
        %v361 = vpack.c.b16 %v332, %v331
        %v362 = vpack.c.b16 %v334, %v333
        %v363 = vpack.c.b16 %v336, %v335
        %v364 = vpack.c.b16 %v338, %v337
        %v365 = vpack.c.b16 %v340, %v339
        %v366 = vpack.c.b16 %v342, %v341
        %v367 = vpack.c.b16 %v344, %v343
        %v368 = vpack.c.b16 %v346, %v345
        %v369 = vpack.c.b16 %v348, %v347
        %v370 = vpack.c.b16 %v350, %v349
        %v371 = vpack.c.b16 %v352, %v351
        %v372 = vpack.c.b16 %v354, %v353
        %v373 = vpack.c.b16 %v356, %v355
        %v374 = vpack.c.b16 %v358, %v357
        %v407 = vunpack.c.l.b16 %v279
        %v408 = vunpack.c.l.b16 %v280
        %v409 = vunpack.c.l.b16 %v281
        %v410 = vunpack.c.l.b16 %v282
        %v411 = vunpack.c.l.b16 %v283
        %v412 = vunpack.c.l.b16 %v284
        %v413 = vunpack.c.l.b16 %v285
        %v414 = vunpack.c.l.b16 %v286
        %v415 = vunpack.c.l.b16 %v287
        %v416 = vunpack.c.l.b16 %v288
        %v417 = vunpack.c.l.b16 %v289
        %v418 = vunpack.c.l.b16 %v290
        %v419 = vunpack.c.l.b16 %v291
        %v420 = vunpack.c.l.b16 %v292
        %v421 = vunpack.c.l.b16 %v293
        %v422 = vunpack.c.l.b16 %v294
        %v423 = vpack.c.b16 %v408, %v407
        %v424 = vpack.c.b16 %v410, %v409
        %v425 = vpack.c.b16 %v412, %v411
        %v426 = vpack.c.b16 %v414, %v413
        %v427 = vpack.c.b16 %v416, %v415
        %v428 = vpack.c.b16 %v418, %v417
        %v429 = vpack.c.b16 %v420, %v419
        %v430 = vpack.c.b16 %v422, %v421
        %439 = vmatprep.subr.bf16.mxu0 0
        %440 = vmatpush1.bf16.msra.mxu0 %v423
        %441 = vmatprep.subr.bf16.mxu0 0
        %442 = vmatpush1.bf16.msra.mxu0 %v424
        %443 = vmatprep.subr.bf16.mxu0 0
        %444 = vmatpush1.bf16.msra.mxu0 %v425
        %445 = vmatprep.subr.bf16.mxu0 0
        %446 = vmatpush1.bf16.msra.mxu0 %v426
        %447 = vmatprep.subr.bf16.mxu0 0
        %448 = vmatpush1.bf16.msra.mxu0 %v427
        %449 = vmatprep.subr.bf16.mxu0 0
        %450 = vmatpush1.bf16.msra.mxu0 %v428
        %451 = vmatprep.subr.bf16.mxu0 0
        %452 = vmatpush1.bf16.msra.mxu0 %v429
        %453 = vmatprep.subr.bf16.mxu0 0
        %454 = vmatpush1.bf16.msra.mxu0 %v430
        %455 = vmatprep.subr.bf16.mxu0 0
        %456 = vmatpush1.bf16.msra.mxu0 0
        %457 = vmatprep.subr.bf16.mxu0 0
        %458 = vmatpush1.bf16.msra.mxu0 0
        %459 = vmatprep.subr.bf16.mxu0 0
        %460 = vmatpush1.bf16.msra.mxu0 0
        %461 = vmatprep.subr.bf16.mxu0 0
        %462 = vmatpush1.bf16.msra.mxu0 0
        %463 = vmatprep.subr.bf16.mxu0 0
        %464 = vmatpush1.bf16.msra.mxu0 0
        %465 = vmatprep.subr.bf16.mxu0 0
        %466 = vmatpush1.bf16.msra.mxu0 0
        %467 = vmatprep.subr.bf16.mxu0 0
        %468 = vmatpush1.bf16.msra.mxu0 0
        %469 = vmatprep.subr.bf16.mxu0 0
        %470 = vmatpush1.bf16.msra.mxu0 0
        %471 = vmatprep.mubr.bf16.mxu0 0
        %472 = vmatmul.mubr.bf16.gmra.mrb[0].mxu0 %v359
        %v473 = vpop.f32.mrb[0].mxu0
        %v474 = vadd.f32 0.0, %v473
        %v475 = vpop.f32.mrb[0].mxu0
        %v476 = vpop.f32.mrb[0].mxu0
        %v477 = vadd.f32 0.0, %v476
        %v478 = vpop.f32.mrb[0].mxu0
        %479 = vmatprep.mubr.bf16.mxu0 0
        %480 = vmatmul.mubr.bf16.gmra.mrb[0].mxu0 %v360
        %v481 = vpop.f32.mrb[0].mxu0
        %v482 = vadd.f32 0.0, %v481
        %v483 = vpop.f32.mrb[0].mxu0
        %v484 = vpop.f32.mrb[0].mxu0
        %v485 = vadd.f32 0.0, %v484
        %v486 = vpop.f32.mrb[0].mxu0
        %487 = vmatprep.mubr.bf16.mxu0 0
        %488 = vmatmul.mubr.bf16.gmra.mrb[0].mxu0 %v361
        %v489 = vpop.f32.mrb[0].mxu0
        %v490 = vadd.f32 0.0, %v489
        %v491 = vpop.f32.mrb[0].mxu0
        %v492 = vpop.f32.mrb[0].mxu0
        %v493 = vadd.f32 0.0, %v492
        %v494 = vpop.f32.mrb[0].mxu0
        %495 = vmatprep.mubr.bf16.mxu0 0
        %496 = vmatmul.mubr.bf16.gmra.mrb[0].mxu0 %v362
        %v497 = vpop.f32.mrb[0].mxu0
        %v498 = vadd.f32 0.0, %v497
        %v499 = vpop.f32.mrb[0].mxu0
        %v500 = vpop.f32.mrb[0].mxu0
        %v501 = vadd.f32 0.0, %v500
        %v502 = vpop.f32.mrb[0].mxu0
        %503 = vmatprep.mubr.bf16.mxu0 0
        %504 = vmatmul.mubr.bf16.gmra.mrb[0].mxu0 %v363
        %v505 = vpop.f32.mrb[0].mxu0
        %v506 = vadd.f32 0.0, %v505
        %v507 = vpop.f32.mrb[0].mxu0
        %v508 = vpop.f32.mrb[0].mxu0
        %v509 = vadd.f32 0.0, %v508
        %v510 = vpop.f32.mrb[0].mxu0
        %511 = vmatprep.mubr.bf16.mxu0 0
        %512 = vmatmul.mubr.bf16.gmra.mrb[0].mxu0 %v364
        %v513 = vpop.f32.mrb[0].mxu0
        %v514 = vadd.f32 0.0, %v513
        %v515 = vpop.f32.mrb[0].mxu0
        %v516 = vpop.f32.mrb[0].mxu0
        %v517 = vadd.f32 0.0, %v516
        %v518 = vpop.f32.mrb[0].mxu0
        %519 = vmatprep.mubr.bf16.mxu0 0
        %520 = vmatmul.mubr.bf16.gmra.mrb[0].mxu0 %v365
        %v521 = vpop.f32.mrb[0].mxu0
        %v522 = vadd.f32 0.0, %v521
        %v523 = vpop.f32.mrb[0].mxu0
        %v524 = vpop.f32.mrb[0].mxu0
        %v525 = vadd.f32 0.0, %v524
        %v526 = vpop.f32.mrb[0].mxu0
        %527 = vmatprep.mubr.bf16.mxu0 0
        %528 = vmatmul.mubr.bf16.gmra.mrb[0].mxu0 %v366
        %v529 = vpop.f32.mrb[0].mxu0
        %v530 = vadd.f32 0.0, %v529
        %v531 = vpop.f32.mrb[0].mxu0
        %v532 = vpop.f32.mrb[0].mxu0
        %v533 = vadd.f32 0.0, %v532
        %v534 = vpop.f32.mrb[0].mxu0
        %535 = vmatprep.mubr.bf16.mxu0 0
        %536 = vmatmul.mubr.bf16.gmra.mrb[0].mxu0 %v367
        %v537 = vpop.f32.mrb[0].mxu0
        %v538 = vadd.f32 0.0, %v537
        %v539 = vpop.f32.mrb[0].mxu0
        %v540 = vpop.f32.mrb[0].mxu0
        %v541 = vadd.f32 0.0, %v540
        %v542 = vpop.f32.mrb[0].mxu0
        %543 = vmatprep.mubr.bf16.mxu0 0
        %544 = vmatmul.mubr.bf16.gmra.mrb[0].mxu0 %v368
        %v545 = vpop.f32.mrb[0].mxu0
        %v546 = vadd.f32 0.0, %v545
        %v547 = vpop.f32.mrb[0].mxu0
        %v548 = vpop.f32.mrb[0].mxu0
        %v549 = vadd.f32 0.0, %v548
        %v550 = vpop.f32.mrb[0].mxu0
        %551 = vmatprep.mubr.bf16.mxu0 0
        %552 = vmatmul.mubr.bf16.gmra.mrb[0].mxu0 %v369
        %v553 = vpop.f32.mrb[0].mxu0
        %v554 = vadd.f32 0.0, %v553
        %v555 = vpop.f32.mrb[0].mxu0
        %v556 = vpop.f32.mrb[0].mxu0
        %v557 = vadd.f32 0.0, %v556
        %v558 = vpop.f32.mrb[0].mxu0
        %559 = vmatprep.mubr.bf16.mxu0 0
        %560 = vmatmul.mubr.bf16.gmra.mrb[0].mxu0 %v370
        %v561 = vpop.f32.mrb[0].mxu0
        %v562 = vadd.f32 0.0, %v561
        %v563 = vpop.f32.mrb[0].mxu0
        %v564 = vpop.f32.mrb[0].mxu0
        %v565 = vadd.f32 0.0, %v564
        %v566 = vpop.f32.mrb[0].mxu0
        %567 = vmatprep.mubr.bf16.mxu0 0
        %568 = vmatmul.mubr.bf16.gmra.mrb[0].mxu0 %v371
        %v569 = vpop.f32.mrb[0].mxu0
        %v570 = vadd.f32 0.0, %v569
        %v571 = vpop.f32.mrb[0].mxu0
        %v572 = vpop.f32.mrb[0].mxu0
        %v573 = vadd.f32 0.0, %v572
        %v574 = vpop.f32.mrb[0].mxu0
        %575 = vmatprep.mubr.bf16.mxu0 0
        %576 = vmatmul.mubr.bf16.gmra.mrb[0].mxu0 %v372
        %v577 = vpop.f32.mrb[0].mxu0
        %v578 = vadd.f32 0.0, %v577
        %v579 = vpop.f32.mrb[0].mxu0
        %v580 = vpop.f32.mrb[0].mxu0
        %v581 = vadd.f32 0.0, %v580
        %v582 = vpop.f32.mrb[0].mxu0
        %583 = vmatprep.mubr.bf16.mxu0 0
        %584 = vmatmul.mubr.bf16.gmra.mrb[0].mxu0 %v373
        %v585 = vpop.f32.mrb[0].mxu0
        %v586 = vadd.f32 0.0, %v585
        %v587 = vpop.f32.mrb[0].mxu0
        %v588 = vpop.f32.mrb[0].mxu0
        %v589 = vadd.f32 0.0, %v588
        %v590 = vpop.f32.mrb[0].mxu0
        %591 = vmatprep.mubr.bf16.mxu0 0
        %592 = vmatmul.mubr.bf16.gmra.mrb[0].mxu0 %v374
        %v593 = vpop.f32.mrb[0].mxu0
        %v594 = vadd.f32 0.0, %v593
        %v595 = vpop.f32.mrb[0].mxu0
        %v596 = vpop.f32.mrb[0].mxu0
        %v597 = vadd.f32 0.0, %v596
        %v598 = vpop.f32.mrb[0].mxu0
        %599 = vdwg.mxu0
        %v600 = vpack.c.bf16 %v477, %v474
        %v601 = vpack.c.bf16 %v485, %v482
        %v602 = vpack.c.bf16 %v493, %v490
        %v603 = vpack.c.bf16 %v501, %v498
        %v604 = vpack.c.bf16 %v509, %v506
        %v605 = vpack.c.bf16 %v517, %v514
        %v606 = vpack.c.bf16 %v525, %v522
        %v607 = vpack.c.bf16 %v533, %v530
        %v608 = vpack.c.bf16 %v541, %v538
        %v609 = vpack.c.bf16 %v549, %v546
        %v610 = vpack.c.bf16 %v557, %v554
        %v611 = vpack.c.bf16 %v565, %v562
        %v612 = vpack.c.bf16 %v573, %v570
        %v613 = vpack.c.bf16 %v581, %v578
        %v614 = vpack.c.bf16 %v589, %v586
        %v615 = vpack.c.bf16 %v597, %v594
        %v632 = vunpack.c.l.b16 %v600
        %v633 = vunpack.c.h.b16 %v600
        %v634 = vunpack.c.l.b16 %v601
        %v635 = vunpack.c.h.b16 %v601
        %v636 = vunpack.c.l.b16 %v602
        %v637 = vunpack.c.h.b16 %v602
        %v638 = vunpack.c.l.b16 %v603
        %v639 = vunpack.c.h.b16 %v603
        %v640 = vunpack.c.l.b16 %v604
        %v641 = vunpack.c.h.b16 %v604
        %v642 = vunpack.c.l.b16 %v605
        %v643 = vunpack.c.h.b16 %v605
        %v644 = vunpack.c.l.b16 %v606
        %v645 = vunpack.c.h.b16 %v606
        %v646 = vunpack.c.l.b16 %v607
        %v647 = vunpack.c.h.b16 %v607
        %v648 = vunpack.c.l.b16 %v608
        %v649 = vunpack.c.h.b16 %v608
        %v650 = vunpack.c.l.b16 %v609
        %v651 = vunpack.c.h.b16 %v609
        %v652 = vunpack.c.l.b16 %v610
        %v653 = vunpack.c.h.b16 %v610
        %v654 = vunpack.c.l.b16 %v611
        %v655 = vunpack.c.h.b16 %v611
        %v656 = vunpack.c.l.b16 %v612
        %v657 = vunpack.c.h.b16 %v612
        %v658 = vunpack.c.l.b16 %v613
        %v659 = vunpack.c.h.b16 %v613
        %v660 = vunpack.c.l.b16 %v614
        %v661 = vunpack.c.h.b16 %v614
        %v662 = vunpack.c.l.b16 %v615
        %v663 = vunpack.c.h.b16 %v615
        %v664 = vpack.c.b16 %v632, %v632
        %v665 = vpack.c.b16 %v633, %v633
        %v666 = vpack.c.b16 %v634, %v634
        %v667 = vpack.c.b16 %v635, %v635
        %v668 = vpack.c.b16 %v636, %v636
        %v669 = vpack.c.b16 %v637, %v637
        %v670 = vpack.c.b16 %v638, %v638
        %v671 = vpack.c.b16 %v639, %v639
        %v672 = vpack.c.b16 %v640, %v640
        %v673 = vpack.c.b16 %v641, %v641
        %v674 = vpack.c.b16 %v642, %v642
        %v675 = vpack.c.b16 %v643, %v643
        %v676 = vpack.c.b16 %v644, %v644
        %v677 = vpack.c.b16 %v645, %v645
        %v678 = vpack.c.b16 %v646, %v646
        %v679 = vpack.c.b16 %v647, %v647
        %v680 = vpack.c.b16 %v648, %v648
        %v681 = vpack.c.b16 %v649, %v649
        %v682 = vpack.c.b16 %v650, %v650
        %v683 = vpack.c.b16 %v651, %v651
        %v684 = vpack.c.b16 %v652, %v652
        %v685 = vpack.c.b16 %v653, %v653
        %v686 = vpack.c.b16 %v654, %v654
        %v687 = vpack.c.b16 %v655, %v655
        %v688 = vpack.c.b16 %v656, %v656
        %v689 = vpack.c.b16 %v657, %v657
        %v690 = vpack.c.b16 %v658, %v658
        %v691 = vpack.c.b16 %v659, %v659
        %v692 = vpack.c.b16 %v660, %v660
        %v693 = vpack.c.b16 %v661, %v661
        %v694 = vpack.c.b16 %v662, %v662
        %v695 = vpack.c.b16 %v663, %v663
        %728 = vst [vmem:[%s242] sm:$0xf] %v664
        %729 = vst [vmem:[%s242 + $0x8] sm:$0xf] %v665
        %730 = vst [vmem:[%s242 + $0x10] sm:$0xf] %v666
        %731 = vst [vmem:[%s242 + $0x18] sm:$0xf] %v667
        %732 = vst [vmem:[%s242 + $0x20] sm:$0xf] %v668
        %733 = vst [vmem:[%s242 + $0x28] sm:$0xf] %v669
        %734 = vst [vmem:[%s242 + $0x30] sm:$0xf] %v670
        %735 = vst [vmem:[%s242 + $0x38] sm:$0xf] %v671
        %736 = vst [vmem:[%s242 + $0x40] sm:$0xf] %v672
        %737 = vst [vmem:[%s242 + $0x48] sm:$0xf] %v673
        %738 = vst [vmem:[%s242 + $0x50] sm:$0xf] %v674
        %739 = vst [vmem:[%s242 + $0x58] sm:$0xf] %v675
        %740 = vst [vmem:[%s242 + $0x60] sm:$0xf] %v676
        %741 = vst [vmem:[%s242 + $0x68] sm:$0xf] %v677
        %742 = vst [vmem:[%s242 + $0x70] sm:$0xf] %v678
        %743 = vst [vmem:[%s242 + $0x78] sm:$0xf] %v679
        %744 = vst [vmem:[%s242 + $0x80] sm:$0xf] %v680
        %745 = vst [vmem:[%s242 + $0x88] sm:$0xf] %v681
        %746 = vst [vmem:[%s242 + $0x90] sm:$0xf] %v682
        %747 = vst [vmem:[%s242 + $0x98] sm:$0xf] %v683
        %748 = vst [vmem:[%s242 + $0xa0] sm:$0xf] %v684
        %749 = vst [vmem:[%s242 + $0xa8] sm:$0xf] %v685
        %750 = vst [vmem:[%s242 + $0xb0] sm:$0xf] %v686
        %751 = vst [vmem:[%s242 + $0xb8] sm:$0xf] %v687
        %752 = vst [vmem:[%s242 + $0xc0] sm:$0xf] %v688
        %753 = vst [vmem:[%s242 + $0xc8] sm:$0xf] %v689
        %754 = vst [vmem:[%s242 + $0xd0] sm:$0xf] %v690
        %755 = vst [vmem:[%s242 + $0xd8] sm:$0xf] %v691
        %756 = vst [vmem:[%s242 + $0xe0] sm:$0xf] %v692
        %757 = vst [vmem:[%s242 + $0xe8] sm:$0xf] %v693
        %758 = vst [vmem:[%s242 + $0xf0] sm:$0xf] %v694
        %759 = vst [vmem:[%s242 + $0xf8] sm:$0xf] %v695
        %v760 = vld [vmem:[%s211] sm:$0xf]
        %v761 = vld [vmem:[%s211 + $0x4] sm:$0xf]
        %v762 = vld [vmem:[%s211 + $0x8] sm:$0xf]
        %v763 = vld [vmem:[%s211 + $0xc] sm:$0xf]
        %v764 = vld [vmem:[%s211 + $0x10] sm:$0xf]
        %v765 = vld [vmem:[%s211 + $0x14] sm:$0xf]
        %v766 = vld [vmem:[%s211 + $0x18] sm:$0xf]
        %v767 = vld [vmem:[%s211 + $0x1c] sm:$0xf]
        %v768 = vld [vmem:[%s211 + $0x20] sm:$0xf]
        %v769 = vld [vmem:[%s211 + $0x24] sm:$0xf]
        %v770 = vld [vmem:[%s211 + $0x28] sm:$0xf]
        %v771 = vld [vmem:[%s211 + $0x2c] sm:$0xf]
        %v772 = vld [vmem:[%s211 + $0x30] sm:$0xf]
        %v773 = vld [vmem:[%s211 + $0x34] sm:$0xf]
        %v774 = vld [vmem:[%s211 + $0x38] sm:$0xf]
        %v775 = vld [vmem:[%s211 + $0x3c] sm:$0xf]
        %v776 = vld [vmem:[%s211 + $0x40] sm:$0xf]
        %v777 = vld [vmem:[%s211 + $0x44] sm:$0xf]
        %v778 = vld [vmem:[%s211 + $0x48] sm:$0xf]
        %v779 = vld [vmem:[%s211 + $0x4c] sm:$0xf]
        %v780 = vld [vmem:[%s211 + $0x50] sm:$0xf]
        %v781 = vld [vmem:[%s211 + $0x54] sm:$0xf]
        %v782 = vld [vmem:[%s211 + $0x58] sm:$0xf]
        %v783 = vld [vmem:[%s211 + $0x5c] sm:$0xf]
        %v784 = vld [vmem:[%s211 + $0x60] sm:$0xf]
        %v785 = vld [vmem:[%s211 + $0x64] sm:$0xf]
        %v786 = vld [vmem:[%s211 + $0x68] sm:$0xf]
        %v787 = vld [vmem:[%s211 + $0x6c] sm:$0xf]
        %v788 = vld [vmem:[%s211 + $0x70] sm:$0xf]
        %v789 = vld [vmem:[%s211 + $0x74] sm:$0xf]
        %v790 = vld [vmem:[%s211 + $0x78] sm:$0xf]
        %v791 = vld [vmem:[%s211 + $0x7c] sm:$0xf]
        %v792 = vld [vmem:[#allocation7] sm:$0xf]
        %v793 = vld [vmem:[#allocation7 + $0x4] sm:$0xf]
        %v794 = vld [vmem:[#allocation7 + $0x8] sm:$0xf]
        %v795 = vld [vmem:[#allocation7 + $0xc] sm:$0xf]
        %v796 = vld [vmem:[#allocation7 + $0x10] sm:$0xf]
        %v797 = vld [vmem:[#allocation7 + $0x14] sm:$0xf]
        %v798 = vld [vmem:[#allocation7 + $0x18] sm:$0xf]
        %v799 = vld [vmem:[#allocation7 + $0x1c] sm:$0xf]
        %v800 = vld [vmem:[#allocation7 + $0x20] sm:$0xf]
        %v801 = vld [vmem:[#allocation7 + $0x24] sm:$0xf]
        %v802 = vld [vmem:[#allocation7 + $0x28] sm:$0xf]
        %v803 = vld [vmem:[#allocation7 + $0x2c] sm:$0xf]
        %v804 = vld [vmem:[#allocation7 + $0x30] sm:$0xf]
        %v805 = vld [vmem:[#allocation7 + $0x34] sm:$0xf]
        %v806 = vld [vmem:[#allocation7 + $0x38] sm:$0xf]
        %v807 = vld [vmem:[#allocation7 + $0x3c] sm:$0xf]
        %v840 = vunpack.c.l.b16 %v760
        %v841 = vunpack.c.l.b16 %v761
        %v842 = vunpack.c.l.b16 %v762
        %v843 = vunpack.c.l.b16 %v763
        %v844 = vunpack.c.l.b16 %v764
        %v845 = vunpack.c.l.b16 %v765
        %v846 = vunpack.c.l.b16 %v766
        %v847 = vunpack.c.l.b16 %v767
        %v848 = vunpack.c.l.b16 %v768
        %v849 = vunpack.c.l.b16 %v769
        %v850 = vunpack.c.l.b16 %v770
        %v851 = vunpack.c.l.b16 %v771
        %v852 = vunpack.c.l.b16 %v772
        %v853 = vunpack.c.l.b16 %v773
        %v854 = vunpack.c.l.b16 %v774
        %v855 = vunpack.c.l.b16 %v775
        %v856 = vunpack.c.l.b16 %v776
        %v857 = vunpack.c.l.b16 %v777
        %v858 = vunpack.c.l.b16 %v778
        %v859 = vunpack.c.l.b16 %v779
        %v860 = vunpack.c.l.b16 %v780
        %v861 = vunpack.c.l.b16 %v781
        %v862 = vunpack.c.l.b16 %v782
        %v863 = vunpack.c.l.b16 %v783
        %v864 = vunpack.c.l.b16 %v784
        %v865 = vunpack.c.l.b16 %v785
        %v866 = vunpack.c.l.b16 %v786
        %v867 = vunpack.c.l.b16 %v787
        %v868 = vunpack.c.l.b16 %v788
        %v869 = vunpack.c.l.b16 %v789
        %v870 = vunpack.c.l.b16 %v790
        %v871 = vunpack.c.l.b16 %v791
        %v872 = vpack.c.b16 %v841, %v840
        %v873 = vpack.c.b16 %v843, %v842
        %v874 = vpack.c.b16 %v845, %v844
        %v875 = vpack.c.b16 %v847, %v846
        %v876 = vpack.c.b16 %v849, %v848
        %v877 = vpack.c.b16 %v851, %v850
        %v878 = vpack.c.b16 %v853, %v852
        %v879 = vpack.c.b16 %v855, %v854
        %v880 = vpack.c.b16 %v857, %v856
        %v881 = vpack.c.b16 %v859, %v858
        %v882 = vpack.c.b16 %v861, %v860
        %v883 = vpack.c.b16 %v863, %v862
        %v884 = vpack.c.b16 %v865, %v864
        %v885 = vpack.c.b16 %v867, %v866
        %v886 = vpack.c.b16 %v869, %v868
        %v887 = vpack.c.b16 %v871, %v870
        %v920 = vunpack.c.l.b16 %v792
        %v921 = vunpack.c.l.b16 %v793
        %v922 = vunpack.c.l.b16 %v794
        %v923 = vunpack.c.l.b16 %v795
        %v924 = vunpack.c.l.b16 %v796
        %v925 = vunpack.c.l.b16 %v797
        %v926 = vunpack.c.l.b16 %v798
        %v927 = vunpack.c.l.b16 %v799
        %v928 = vunpack.c.l.b16 %v800
        %v929 = vunpack.c.l.b16 %v801
        %v930 = vunpack.c.l.b16 %v802
        %v931 = vunpack.c.l.b16 %v803
        %v932 = vunpack.c.l.b16 %v804
        %v933 = vunpack.c.l.b16 %v805
        %v934 = vunpack.c.l.b16 %v806
        %v935 = vunpack.c.l.b16 %v807
        %v936 = vpack.c.b16 %v921, %v920
        %v937 = vpack.c.b16 %v923, %v922
        %v938 = vpack.c.b16 %v925, %v924
        %v939 = vpack.c.b16 %v927, %v926
        %v940 = vpack.c.b16 %v929, %v928
        %v941 = vpack.c.b16 %v931, %v930
        %v942 = vpack.c.b16 %v933, %v932
        %v943 = vpack.c.b16 %v935, %v934
        %952 = vmatprep.subr.bf16.mxu0 0
        %953 = vmatpush1.bf16.msra.mxu0 %v936
        %954 = vmatprep.subr.bf16.mxu0 0
        %955 = vmatpush1.bf16.msra.mxu0 %v937
        %956 = vmatprep.subr.bf16.mxu0 0
        %957 = vmatpush1.bf16.msra.mxu0 %v938
        %958 = vmatprep.subr.bf16.mxu0 0
        %959 = vmatpush1.bf16.msra.mxu0 %v939
        %960 = vmatprep.subr.bf16.mxu0 0
        %961 = vmatpush1.bf16.msra.mxu0 %v940
        %962 = vmatprep.subr.bf16.mxu0 0
        %963 = vmatpush1.bf16.msra.mxu0 %v941
        %964 = vmatprep.subr.bf16.mxu0 0
        %965 = vmatpush1.bf16.msra.mxu0 %v942
        %966 = vmatprep.subr.bf16.mxu0 0
        %967 = vmatpush1.bf16.msra.mxu0 %v943
        %968 = vmatprep.subr.bf16.mxu0 0
        %969 = vmatpush1.bf16.msra.mxu0 0
        %970 = vmatprep.subr.bf16.mxu0 0
        %971 = vmatpush1.bf16.msra.mxu0 0
        %972 = vmatprep.subr.bf16.mxu0 0
        %973 = vmatpush1.bf16.msra.mxu0 0
        %974 = vmatprep.subr.bf16.mxu0 0
        %975 = vmatpush1.bf16.msra.mxu0 0
        %976 = vmatprep.subr.bf16.mxu0 0
        %977 = vmatpush1.bf16.msra.mxu0 0
        %978 = vmatprep.subr.bf16.mxu0 0
        %979 = vmatpush1.bf16.msra.mxu0 0
        %980 = vmatprep.subr.bf16.mxu0 0
        %981 = vmatpush1.bf16.msra.mxu0 0
        %982 = vmatprep.subr.bf16.mxu0 0
        %983 = vmatpush1.bf16.msra.mxu0 0
        %984 = vmatprep.mubr.bf16.mxu0 0
        %985 = vmatmul.mubr.bf16.gmra.mrb[0].mxu0 %v872
        %v986 = vpop.f32.mrb[0].mxu0
        %v987 = vadd.f32 0.0, %v986
        %v988 = vpop.f32.mrb[0].mxu0
        %v989 = vpop.f32.mrb[0].mxu0
        %v990 = vadd.f32 0.0, %v989
        %v991 = vpop.f32.mrb[0].mxu0
        %992 = vmatprep.mubr.bf16.mxu0 0
        %993 = vmatmul.mubr.bf16.gmra.mrb[0].mxu0 %v873
        %v994 = vpop.f32.mrb[0].mxu0
        %v995 = vadd.f32 0.0, %v994
        %v996 = vpop.f32.mrb[0].mxu0
        %v997 = vpop.f32.mrb[0].mxu0
        %v998 = vadd.f32 0.0, %v997
        %v999 = vpop.f32.mrb[0].mxu0
        %1000 = vmatprep.mubr.bf16.mxu0 0
        %1001 = vmatmul.mubr.bf16.gmra.mrb[0].mxu0 %v874
        %v1002 = vpop.f32.mrb[0].mxu0
        %v1003 = vadd.f32 0.0, %v1002
        %v1004 = vpop.f32.mrb[0].mxu0
        %v1005 = vpop.f32.mrb[0].mxu0
        %v1006 = vadd.f32 0.0, %v1005
        %v1007 = vpop.f32.mrb[0].mxu0
        %1008 = vmatprep.mubr.bf16.mxu0 0
        %1009 = vmatmul.mubr.bf16.gmra.mrb[0].mxu0 %v875
        %v1010 = vpop.f32.mrb[0].mxu0
        %v1011 = vadd.f32 0.0, %v1010
        %v1012 = vpop.f32.mrb[0].mxu0
        %v1013 = vpop.f32.mrb[0].mxu0
        %v1014 = vadd.f32 0.0, %v1013
        %v1015 = vpop.f32.mrb[0].mxu0
        %1016 = vmatprep.mubr.bf16.mxu0 0
        %1017 = vmatmul.mubr.bf16.gmra.mrb[0].mxu0 %v876
        %v1018 = vpop.f32.mrb[0].mxu0
        %v1019 = vadd.f32 0.0, %v1018
        %v1020 = vpop.f32.mrb[0].mxu0
        %v1021 = vpop.f32.mrb[0].mxu0
        %v1022 = vadd.f32 0.0, %v1021
        %v1023 = vpop.f32.mrb[0].mxu0
        %1024 = vmatprep.mubr.bf16.mxu0 0
        %1025 = vmatmul.mubr.bf16.gmra.mrb[0].mxu0 %v877
        %v1026 = vpop.f32.mrb[0].mxu0
        %v1027 = vadd.f32 0.0, %v1026
        %v1028 = vpop.f32.mrb[0].mxu0
        %v1029 = vpop.f32.mrb[0].mxu0
        %v1030 = vadd.f32 0.0, %v1029
        %v1031 = vpop.f32.mrb[0].mxu0
        %1032 = vmatprep.mubr.bf16.mxu0 0
        %1033 = vmatmul.mubr.bf16.gmra.mrb[0].mxu0 %v878
        %v1034 = vpop.f32.mrb[0].mxu0
        %v1035 = vadd.f32 0.0, %v1034
        %v1036 = vpop.f32.mrb[0].mxu0
        %v1037 = vpop.f32.mrb[0].mxu0
        %v1038 = vadd.f32 0.0, %v1037
        %v1039 = vpop.f32.mrb[0].mxu0
        %1040 = vmatprep.mubr.bf16.mxu0 0
        %1041 = vmatmul.mubr.bf16.gmra.mrb[0].mxu0 %v879
        %v1042 = vpop.f32.mrb[0].mxu0
        %v1043 = vadd.f32 0.0, %v1042
        %v1044 = vpop.f32.mrb[0].mxu0
        %v1045 = vpop.f32.mrb[0].mxu0
        %v1046 = vadd.f32 0.0, %v1045
        %v1047 = vpop.f32.mrb[0].mxu0
        %1048 = vmatprep.mubr.bf16.mxu0 0
        %1049 = vmatmul.mubr.bf16.gmra.mrb[0].mxu0 %v880
        %v1050 = vpop.f32.mrb[0].mxu0
        %v1051 = vadd.f32 0.0, %v1050
        %v1052 = vpop.f32.mrb[0].mxu0
        %v1053 = vpop.f32.mrb[0].mxu0
        %v1054 = vadd.f32 0.0, %v1053
        %v1055 = vpop.f32.mrb[0].mxu0
        %1056 = vmatprep.mubr.bf16.mxu0 0
        %1057 = vmatmul.mubr.bf16.gmra.mrb[0].mxu0 %v881
        %v1058 = vpop.f32.mrb[0].mxu0
        %v1059 = vadd.f32 0.0, %v1058
        %v1060 = vpop.f32.mrb[0].mxu0
        %v1061 = vpop.f32.mrb[0].mxu0
        %v1062 = vadd.f32 0.0, %v1061
        %v1063 = vpop.f32.mrb[0].mxu0
        %1064 = vmatprep.mubr.bf16.mxu0 0
        %1065 = vmatmul.mubr.bf16.gmra.mrb[0].mxu0 %v882
        %v1066 = vpop.f32.mrb[0].mxu0
        %v1067 = vadd.f32 0.0, %v1066
        %v1068 = vpop.f32.mrb[0].mxu0
        %v1069 = vpop.f32.mrb[0].mxu0
        %v1070 = vadd.f32 0.0, %v1069
        %v1071 = vpop.f32.mrb[0].mxu0
        %1072 = vmatprep.mubr.bf16.mxu0 0
        %1073 = vmatmul.mubr.bf16.gmra.mrb[0].mxu0 %v883
        %v1074 = vpop.f32.mrb[0].mxu0
        %v1075 = vadd.f32 0.0, %v1074
        %v1076 = vpop.f32.mrb[0].mxu0
        %v1077 = vpop.f32.mrb[0].mxu0
        %v1078 = vadd.f32 0.0, %v1077
        %v1079 = vpop.f32.mrb[0].mxu0
        %1080 = vmatprep.mubr.bf16.mxu0 0
        %1081 = vmatmul.mubr.bf16.gmra.mrb[0].mxu0 %v884
        %v1082 = vpop.f32.mrb[0].mxu0
        %v1083 = vadd.f32 0.0, %v1082
        %v1084 = vpop.f32.mrb[0].mxu0
        %v1085 = vpop.f32.mrb[0].mxu0
        %v1086 = vadd.f32 0.0, %v1085
        %v1087 = vpop.f32.mrb[0].mxu0
        %1088 = vmatprep.mubr.bf16.mxu0 0
        %1089 = vmatmul.mubr.bf16.gmra.mrb[0].mxu0 %v885
        %v1090 = vpop.f32.mrb[0].mxu0
        %v1091 = vadd.f32 0.0, %v1090
        %v1092 = vpop.f32.mrb[0].mxu0
        %v1093 = vpop.f32.mrb[0].mxu0
        %v1094 = vadd.f32 0.0, %v1093
        %v1095 = vpop.f32.mrb[0].mxu0
        %1096 = vmatprep.mubr.bf16.mxu0 0
        %1097 = vmatmul.mubr.bf16.gmra.mrb[0].mxu0 %v886
        %v1098 = vpop.f32.mrb[0].mxu0
        %v1099 = vadd.f32 0.0, %v1098
        %v1100 = vpop.f32.mrb[0].mxu0
        %v1101 = vpop.f32.mrb[0].mxu0
        %v1102 = vadd.f32 0.0, %v1101
        %v1103 = vpop.f32.mrb[0].mxu0
        %1104 = vmatprep.mubr.bf16.mxu0 0
        %1105 = vmatmul.mubr.bf16.gmra.mrb[0].mxu0 %v887
        %v1106 = vpop.f32.mrb[0].mxu0
        %v1107 = vadd.f32 0.0, %v1106
        %v1108 = vpop.f32.mrb[0].mxu0
        %v1109 = vpop.f32.mrb[0].mxu0
        %v1110 = vadd.f32 0.0, %v1109
        %v1111 = vpop.f32.mrb[0].mxu0
        %1112 = vdwg.mxu0
        %v1113 = vpack.c.bf16 %v990, %v987
        %v1114 = vpack.c.bf16 %v998, %v995
        %v1115 = vpack.c.bf16 %v1006, %v1003
        %v1116 = vpack.c.bf16 %v1014, %v1011
        %v1117 = vpack.c.bf16 %v1022, %v1019
        %v1118 = vpack.c.bf16 %v1030, %v1027
        %v1119 = vpack.c.bf16 %v1038, %v1035
        %v1120 = vpack.c.bf16 %v1046, %v1043
        %v1121 = vpack.c.bf16 %v1054, %v1051
        %v1122 = vpack.c.bf16 %v1062, %v1059
        %v1123 = vpack.c.bf16 %v1070, %v1067
        %v1124 = vpack.c.bf16 %v1078, %v1075
        %v1125 = vpack.c.bf16 %v1086, %v1083
        %v1126 = vpack.c.bf16 %v1094, %v1091
        %v1127 = vpack.c.bf16 %v1102, %v1099
        %v1128 = vpack.c.bf16 %v1110, %v1107
        %v1145 = vunpack.c.l.b16 %v1113
        %v1146 = vunpack.c.h.b16 %v1113
        %v1147 = vunpack.c.l.b16 %v1114
        %v1148 = vunpack.c.h.b16 %v1114
        %v1149 = vunpack.c.l.b16 %v1115
        %v1150 = vunpack.c.h.b16 %v1115
        %v1151 = vunpack.c.l.b16 %v1116
        %v1152 = vunpack.c.h.b16 %v1116
        %v1153 = vunpack.c.l.b16 %v1117
        %v1154 = vunpack.c.h.b16 %v1117
        %v1155 = vunpack.c.l.b16 %v1118
        %v1156 = vunpack.c.h.b16 %v1118
        %v1157 = vunpack.c.l.b16 %v1119
        %v1158 = vunpack.c.h.b16 %v1119
        %v1159 = vunpack.c.l.b16 %v1120
        %v1160 = vunpack.c.h.b16 %v1120
        %v1161 = vunpack.c.l.b16 %v1121
        %v1162 = vunpack.c.h.b16 %v1121
        %v1163 = vunpack.c.l.b16 %v1122
        %v1164 = vunpack.c.h.b16 %v1122
        %v1165 = vunpack.c.l.b16 %v1123
        %v1166 = vunpack.c.h.b16 %v1123
        %v1167 = vunpack.c.l.b16 %v1124
        %v1168 = vunpack.c.h.b16 %v1124
        %v1169 = vunpack.c.l.b16 %v1125
        %v1170 = vunpack.c.h.b16 %v1125
        %v1171 = vunpack.c.l.b16 %v1126
        %v1172 = vunpack.c.h.b16 %v1126
        %v1173 = vunpack.c.l.b16 %v1127
        %v1174 = vunpack.c.h.b16 %v1127
        %v1175 = vunpack.c.l.b16 %v1128
        %v1176 = vunpack.c.h.b16 %v1128
        %v1177 = vpack.c.b16 %v1145, %v1145
        %v1178 = vpack.c.b16 %v1146, %v1146
        %v1179 = vpack.c.b16 %v1147, %v1147
        %v1180 = vpack.c.b16 %v1148, %v1148
        %v1181 = vpack.c.b16 %v1149, %v1149
        %v1182 = vpack.c.b16 %v1150, %v1150
        %v1183 = vpack.c.b16 %v1151, %v1151
        %v1184 = vpack.c.b16 %v1152, %v1152
        %v1185 = vpack.c.b16 %v1153, %v1153
        %v1186 = vpack.c.b16 %v1154, %v1154
        %v1187 = vpack.c.b16 %v1155, %v1155
        %v1188 = vpack.c.b16 %v1156, %v1156
        %v1189 = vpack.c.b16 %v1157, %v1157
        %v1190 = vpack.c.b16 %v1158, %v1158
        %v1191 = vpack.c.b16 %v1159, %v1159
        %v1192 = vpack.c.b16 %v1160, %v1160
        %v1193 = vpack.c.b16 %v1161, %v1161
        %v1194 = vpack.c.b16 %v1162, %v1162
        %v1195 = vpack.c.b16 %v1163, %v1163
        %v1196 = vpack.c.b16 %v1164, %v1164
        %v1197 = vpack.c.b16 %v1165, %v1165
        %v1198 = vpack.c.b16 %v1166, %v1166
        %v1199 = vpack.c.b16 %v1167, %v1167
        %v1200 = vpack.c.b16 %v1168, %v1168
        %v1201 = vpack.c.b16 %v1169, %v1169
        %v1202 = vpack.c.b16 %v1170, %v1170
        %v1203 = vpack.c.b16 %v1171, %v1171
        %v1204 = vpack.c.b16 %v1172, %v1172
        %v1205 = vpack.c.b16 %v1173, %v1173
        %v1206 = vpack.c.b16 %v1174, %v1174
        %v1207 = vpack.c.b16 %v1175, %v1175
        %v1208 = vpack.c.b16 %v1176, %v1176
        %1241 = vst [vmem:[%s242 + $0x4] sm:$0xf] %v1177
        %1242 = vst [vmem:[%s242 + $0xc] sm:$0xf] %v1178
        %1243 = vst [vmem:[%s242 + $0x14] sm:$0xf] %v1179
        %1244 = vst [vmem:[%s242 + $0x1c] sm:$0xf] %v1180
        %1245 = vst [vmem:[%s242 + $0x24] sm:$0xf] %v1181
        %1246 = vst [vmem:[%s242 + $0x2c] sm:$0xf] %v1182
        %1247 = vst [vmem:[%s242 + $0x34] sm:$0xf] %v1183
        %1248 = vst [vmem:[%s242 + $0x3c] sm:$0xf] %v1184
        %1249 = vst [vmem:[%s242 + $0x44] sm:$0xf] %v1185
        %1250 = vst [vmem:[%s242 + $0x4c] sm:$0xf] %v1186
        %1251 = vst [vmem:[%s242 + $0x54] sm:$0xf] %v1187
        %1252 = vst [vmem:[%s242 + $0x5c] sm:$0xf] %v1188
        %1253 = vst [vmem:[%s242 + $0x64] sm:$0xf] %v1189
        %1254 = vst [vmem:[%s242 + $0x6c] sm:$0xf] %v1190
        %1255 = vst [vmem:[%s242 + $0x74] sm:$0xf] %v1191
        %1256 = vst [vmem:[%s242 + $0x7c] sm:$0xf] %v1192
        %1257 = vst [vmem:[%s242 + $0x84] sm:$0xf] %v1193
        %1258 = vst [vmem:[%s242 + $0x8c] sm:$0xf] %v1194
        %1259 = vst [vmem:[%s242 + $0x94] sm:$0xf] %v1195
        %1260 = vst [vmem:[%s242 + $0x9c] sm:$0xf] %v1196
        %1261 = vst [vmem:[%s242 + $0xa4] sm:$0xf] %v1197
        %1262 = vst [vmem:[%s242 + $0xac] sm:$0xf] %v1198
        %1263 = vst [vmem:[%s242 + $0xb4] sm:$0xf] %v1199
        %1264 = vst [vmem:[%s242 + $0xbc] sm:$0xf] %v1200
        %1265 = vst [vmem:[%s242 + $0xc4] sm:$0xf] %v1201
        %1266 = vst [vmem:[%s242 + $0xcc] sm:$0xf] %v1202
        %1267 = vst [vmem:[%s242 + $0xd4] sm:$0xf] %v1203
        %1268 = vst [vmem:[%s242 + $0xdc] sm:$0xf] %v1204
        %1269 = vst [vmem:[%s242 + $0xe4] sm:$0xf] %v1205
        %1270 = vst [vmem:[%s242 + $0xec] sm:$0xf] %v1206
        %1271 = vst [vmem:[%s242 + $0xf4] sm:$0xf] %v1207
        %1272 = vst [vmem:[%s242 + $0xfc] sm:$0xf] %v1208
        %s1273 = sand.u32 %s104, 1
        %s1274 = scalar_lea.sflag [#allocation4], %s1273
        %s1275 = sand.u32 %s104, 1
        %s1276 = smul.addr %s1275, 256
        %s1277 = scalar_lea.vmem [#allocation8], %s1276
        // Predicated region
        $region45: #{tpu_custom_call.1} parent=31 // pred_check
          %p1278 = pneg %p114
        $region46: #{tpu_custom_call.1} parent=31 // pred_check_branch
          %1280 = sbr.rel (%p1278) target = $region48
        $region47: #{tpu_custom_call.1} parent=31 // pred_region
          %s1281 = smul.u32 32, %s23
          %s1283 = ssub.s32 4096, 4096
          %1284 = vsyncadd %s1274, %s1283
          %s1285 = smul.addr %s1281, 2
          %s1286 = smul.addr %s1285, 64
          %s1287 = scalar_lea.hbm %s3, %s1286
          %s1288 = sshll.u32 %s1277, 4
          %s1289 = int_to_ptr.vmem [resolvable:$true] %s1288
          %1294 = dma.vmem_to_hbm [thread:$0]  %s1289, 4096, %s1287, %s1274, 128, 128, 8
        $region48: #{tpu_custom_call.1} parent=31 // pred_fallthru
          _
      $region32: #{tpu_custom_call.1} parent=5 // pred_fallthru
        _
      %p1295 = scmp.le.s32.totalorder 2, %s18
      // Predicated region
      $region49: #{tpu_custom_call.1} parent=5 // pred_check
        %p1296 = pneg %p1295
      $region50: #{tpu_custom_call.1} parent=5 // pred_check_branch
        %1298 = sbr.rel (%p1296) target = $region52
      $region51: #{tpu_custom_call.1} parent=5 // pred_region
        %s1299 = ssub.s32 %s18, 2
        // Predicated region
        $region53: #{tpu_custom_call.1} parent=51 // pred_check
          %p1300 = pneg %p120
        $region54: #{tpu_custom_call.1} parent=51 // pred_check_branch
          %1302 = sbr.rel (%p1300) target = $region56
        $region55: #{tpu_custom_call.1} parent=51 // pred_region
          %s1303 = sand.u32 %s105, 1
          %s1304 = scalar_lea.sflag [#allocation4], %s1303
          %s1305 = sand.u32 %s105, 1
          %s1306 = smul.addr %s1305, 256
          %s1307 = scalar_lea.vmem [#allocation8], %s1306
          %1308 = dma.done %s1304, 4096
        $region56: #{tpu_custom_call.1} parent=51 // pred_fallthru
          _
      $region52: #{tpu_custom_call.1} parent=5 // pred_fallthru
        _
    $region6: #{tpu_custom_call.1} parent=1 // loop_footer
      %s22 = sadd.s32 1, %s18
    $region7: #{tpu_custom_call.1} parent=1 // loop_footer_branch
      %17 = sbr.rel target = $region3
    $region8: #{tpu_custom_call.1} parent=1 // loop_exit
      _
    %1309 = vsyncpa [#allocation3], 1
    %s1310 = scalar_lea.sflag [#allocation3], 1
    %1311 = vsyncpa %s1310, 1
    %1312 = vsyncpa [#allocation6], 1
    %s1313 = scalar_lea.sflag [#allocation6], 1
    %1314 = vsyncpa %s1313, 1
    %1315 = vsyncpa [#allocation4], 1
    %s1316 = scalar_lea.sflag [#allocation4], 1
    %1317 = vsyncpa %s1316, 1

</llo_original>
